<compile_context>
chip_gen: v7x
topology: tpu7x:2x2x1
jax: 0.10.0
libtpu: 0.0.40
codegen_flags: <defaults>
</compile_context>

<pallas_src>
import jax
import jax.numpy as jnp
from jax.experimental import pallas as pl
from jax.experimental.pallas import tpu as pltpu

SIGMA = 3.0          # default sigma of opencood's weighted_smooth_l1_loss
SIGMA2 = SIGMA * SIGMA
TILE_CAP = 8192      # lanes per grid step (768 KiB block; single step for typical N)


def _smooth_l1(pred, tgt):
    """weighted_smooth_l1_loss (per element, no weights) from opencood."""
    ad = jnp.abs(pred - tgt)
    return jnp.where(ad <= 1.0 / SIGMA2,
                     0.5 * SIGMA2 * ad * ad,
                     ad - 0.5 / SIGMA2)


def _make_rcnn_loss_kernel(tile):
    """tile (lanes per grid step, multiple of 128) is static."""
    n_chunks = tile // 128

    def kernel(packed_ref, out_ref):
        @pl.when(pl.program_id(0) == 0)
        def _():
            out_ref[...] = jnp.zeros_like(out_ref)

        bce_p = jnp.zeros((1, 128), jnp.float32)
        iou_p = jnp.zeros((1, 128), jnp.float32)
        reg_p = jnp.zeros((8, 128), jnp.float32)

        # Vreg-aligned 128-lane chunks; all indices static -> no relayout,
        # only VALU adds on the per-step path (no XLU reduce trees).
        for c in range(n_chunks):
            sl = slice(c * 128, (c + 1) * 128)
            x = packed_ref[0:1, sl]      # cls logits (padded lanes = -1e4)
            z = packed_ref[1:2, sl]      # cls target (padded lanes = 0)
            p = packed_ref[2:3, sl]      # iou pred
            t = packed_ref[3:4, sl]      # iou target
            w = packed_ref[4:5, sl]      # normalized reg weight (padded = 0)
            reg = packed_ref[8:16, sl]   # reg pred, channel-major (8, 128)
            treg = packed_ref[16:24, sl]  # reg target, channel-major

            # numerically stable BCE-with-logits (== torch BCEWithLogits);
            # padded lanes (x=-1e4, z=0) contribute exactly 0.
            bce_p = bce_p + (jnp.maximum(x, 0.0) - x * z
                             + jnp.log(1.0 + jnp.exp(-jnp.abs(x))))
            # iou smooth-L1 weighted by cls target (z==0 on padded lanes -> 0)
            iou_p = iou_p + _smooth_l1(p, t) * z
            # reg smooth-L1; w broadcasts (1,128)->(8,128); padded channel /
            # padded lanes are zero in pred, target and weight -> contribute 0.
            reg_p = reg_p + _smooth_l1(reg, treg) * w

        # Resident accumulator: rows 0-7 reg channel partials, 8 bce, 9 iou.
        out_ref[0:8, :] = out_ref[0:8, :] + reg_p
        out_ref[8:9, :] = out_ref[8:9, :] + bce_p
        out_ref[9:10, :] = out_ref[9:10, :] + iou_p

    return kernel


def _rcnn_losses_pallas(packed, tile):
    """packed: (24, N_pad) f32, N_pad a multiple of `tile` (tile % 128 == 0)."""
    n_pad = packed.shape[1]
    grid = (n_pad // tile,)

    out = pl.pallas_call(
        _make_rcnn_loss_kernel(tile),
        grid=grid,
        in_specs=[pl.BlockSpec((24, tile), lambda i: (0, i))],
        out_specs=pl.BlockSpec((16, 128), lambda i: (0, 0)),
        out_shape=jax.ShapeDtypeStruct((16, 128), jnp.float32),
        # Grid axis is a reduction (resident accumulator output) -> arbitrary.
        compiler_params=pltpu.CompilerParams(
            dimension_semantics=("arbitrary",)),
    )(packed)
    return out


def fpvrcnn_loss(args, rcnn_cls, rcnn_iou, rcnn_reg,
                 tgt_cls, tgt_iou, tgt_reg, ciassd_loss, rng_key):
    """Forward of FpvrcnnLoss for the case where 'fpvrcnn_out' is present.

    ciassd_loss: scalar stage-1 loss.
    # TODO(synk): CiassdLoss (stage1) is an external module not provided in the
    # source snippet; it is treated here as a precomputed scalar input.
    """
    n = rcnn_cls.size
    f32 = jnp.float32

    cls1 = rcnn_cls.reshape(-1).astype(f32)
    iou1 = rcnn_iou.reshape(-1).astype(f32)
    reg1 = rcnn_reg.reshape(-1, 7).astype(f32)
    tcls1 = tgt_cls.reshape(-1).astype(f32)
    tiou1 = tgt_iou.reshape(-1).astype(f32)
    treg1 = tgt_reg.reshape(-1, 7).astype(f32)

    # ---- positive-sample subsampling (mirrors the torch randperm logic) ----
    weights = jnp.where(tcls1 == 0, 0.0, 1.0)
    neg = (tiou1 < 0.7) & (tcls1 != 0)
    pos = (tiou1 >= 0.7) & (tcls1 != 0)
    num_neg = jnp.sum(neg)
    num_pos = jnp.sum(pos)
    num_pos_smps = jnp.maximum(num_neg, 2)
    k = num_pos - num_pos_smps
    # len(randperm(num_pos)[:k]) == k if k >= 0 else max(num_pos + k, 0)
    num_drop = jnp.where(k >= 0, k, jnp.maximum(num_pos + k, 0))
    # value-only sort + threshold compare (no argsort, no scatter): drop the
    # num_drop positives with the smallest random priority.
    prio = jnp.where(pos, jax.random.uniform(rng_key, (n,)), jnp.inf)
    sorted_prio = jnp.sort(prio)
    thr = jax.lax.dynamic_index_in_dim(
        sorted_prio, jnp.maximum(num_drop - 1, 0), keepdims=False)
    thr = jnp.where(num_drop > 0, thr, -jnp.inf)
    drop = pos & (prio <= thr)
    weights = jnp.where(drop, 0.0, weights)
    reg_w = weights / jnp.maximum(jnp.sum(weights), 1.0)

    # ---- pack everything into one (24, N_pad) tensor for the kernel ----
    n_pad128 = -(-n // 128) * 128
    tile = min(TILE_CAP, n_pad128)
    n_pad = -(-n_pad128 // tile) * tile      # multiple of tile
    pad = n_pad - n

    base = jnp.concatenate([
        cls1[None, :], tcls1[None, :], iou1[None, :], tiou1[None, :],
        reg_w[None, :],
        jnp.zeros((3, n), f32),
        reg1.T, jnp.zeros((1, n), f32),      # reg pred, channel-major (8, n)
        treg1.T, jnp.zeros((1, n), f32),     # reg target, channel-major (8, n)
    ], axis=0)                               # (24, n)
    packed = jnp.pad(base, ((0, 0), (0, pad)))
    if pad > 0:
        # Padded cls logits = -1e4 -> exactly 0 BCE on padded lanes in f32.
        packed = packed.at[0, n:].set(-1e4)

    sums = _rcnn_losses_pallas(packed, tile)   # (16, 128) partials
    reg_sum = jnp.sum(sums[0:8, :])
    bce_sum = jnp.sum(sums[8, :])
    iou_sum = jnp.sum(sums[9, :])

    loss_cls = bce_sum / n          # BCEWithLogits default reduction='mean'
    loss_iou = iou_sum / n          # .mean() over (1, N, 1)
    loss_reg = reg_sum              # .sum()

    loss_cls_reduced = loss_cls * args['stage2']['cls']['weight']
    loss_iou_reduced = loss_iou * args['stage2']['iou']['weight']
    loss_reg_reduced = loss_reg * args['stage2']['reg']['weight']
    rcnn_loss = loss_cls_reduced + loss_iou_reduced + loss_reg_reduced
    loss = rcnn_loss + ciassd_loss

    return {
        'loss': loss,
        'rcnn_loss': rcnn_loss,
        'cls_loss': loss_cls_reduced,
        'iou_loss': loss_iou_reduced,
        'reg_loss': loss_reg_reduced,
    }


if __name__ == "__main__":
    # deterministic config (weights normally come from the yaml args dict)
    args = {
        'stage1': {},   # unused here (CiassdLoss external, see TODO above)
        'stage2': {
            'cls': {'weight': 1.0},
            'iou': {'weight': 1.0},
            'reg': {'weight': 2.0},
        },
    }

    N = 100  # number of RoIs
    key = jax.random.PRNGKey(0)
    k1, k2, k3, k4, k5, k6, k7 = jax.random.split(key, 7)

    rcnn_cls = jax.random.normal(k1, (1, N, 1), dtype=jnp.float32)
    rcnn_iou = jax.random.uniform(k2, (1, N, 1), dtype=jnp.float32)
    rcnn_reg = 0.1 * jax.random.normal(k3, (1, N, 7), dtype=jnp.float32)
    tgt_cls = (jax.random.uniform(k4, (1, N, 1)) > 0.5).astype(jnp.float32)
    tgt_iou = jax.random.uniform(k5, (1, N, 1), dtype=jnp.float32)
    tgt_reg = 0.1 * jax.random.normal(k6, (1, N, 7), dtype=jnp.float32)
    ciassd_loss = jnp.float32(0.0)  # TODO(synk): stage-1 CiassdLoss placeholder

    out = fpvrcnn_loss(args, rcnn_cls, rcnn_iou, rcnn_reg,
                       tgt_cls, tgt_iou, tgt_reg, ciassd_loss, k7)
    jax.block_until_ready(out['loss'])
    print("KERNEL_OK")
</pallas_src>

<mosaic_0001>
module attributes {stable_mosaic.version = 11 : i64} {
  func.func @kernel(%arg0: i32, %arg1: memref<24x128xf32, #tpu.memory_space<vmem>>, %arg2: memref<16x128xf32, #tpu.memory_space<vmem>>) attributes {dimension_semantics = [#tpu.dimension_semantics<arbitrary>], iteration_bounds = array<i64: 1>, scalar_prefetch = 0 : i64, scratch_operands = 0 : i64, tpu.core_type = #tpu.core_type<tc>, window_params = [{transform_indices = @transform_0, window_bounds = array<i64: 24, 128>}, {pipeline_mode = #tpu.pipeline_mode<synchronous>, transform_indices = @transform_1, window_bounds = array<i64: 16, 128>}]} {
    %c0_i32 = arith.constant 0 : i32
    %0 = arith.cmpi eq, %arg0, %c0_i32 : i32
    %1 = arith.extui %0 : i1 to i32
    %c0_i32_0 = arith.constant 0 : i32
    %2 = arith.cmpi ne, %1, %c0_i32_0 : i32
    scf.if %2 {
      %cst_30 = arith.constant 0.000000e+00 : f32
      %60 = vector.broadcast %cst_30 : f32 to vector<16x128xf32>
      %c0_31 = arith.constant 0 : index
      %c0_32 = arith.constant 0 : index
      %61 = vector.load %arg2[%c0_31, %c0_32] : memref<16x128xf32, #tpu.memory_space<vmem>>, vector<16x128xf32>
      tpu.vector_store %arg2[%c0_31, %c0_32], %60 {strides = array<i32>} : memref<16x128xf32, #tpu.memory_space<vmem>>, vector<16x128xf32>,
    } else {
    }
    %cst = arith.constant 0.000000e+00 : f32
    %3 = vector.broadcast %cst : f32 to vector<1x128xf32>
    %cst_1 = arith.constant 0.000000e+00 : f32
    %4 = vector.broadcast %cst_1 : f32 to vector<1x128xf32>
    %cst_2 = arith.constant 0.000000e+00 : f32
    %5 = vector.broadcast %cst_2 : f32 to vector<8x128xf32>
    %c0 = arith.constant 0 : index
    %c0_3 = arith.constant 0 : index
    %6 = vector.load %arg1[%c0, %c0_3] : memref<24x128xf32, #tpu.memory_space<vmem>>, vector<1x128xf32>
    %c1 = arith.constant 1 : index
    %c0_4 = arith.constant 0 : index
    %7 = vector.load %arg1[%c1, %c0_4] : memref<24x128xf32, #tpu.memory_space<vmem>>, vector<1x128xf32>
    %c2 = arith.constant 2 : index
    %c0_5 = arith.constant 0 : index
    %8 = vector.load %arg1[%c2, %c0_5] : memref<24x128xf32, #tpu.memory_space<vmem>>, vector<1x128xf32>
    %c3 = arith.constant 3 : index
    %c0_6 = arith.constant 0 : index
    %9 = vector.load %arg1[%c3, %c0_6] : memref<24x128xf32, #tpu.memory_space<vmem>>, vector<1x128xf32>
    %c4 = arith.constant 4 : index
    %c0_7 = arith.constant 0 : index
    %10 = vector.load %arg1[%c4, %c0_7] : memref<24x128xf32, #tpu.memory_space<vmem>>, vector<1x128xf32>
    %c8 = arith.constant 8 : index
    %c0_8 = arith.constant 0 : index
    %11 = vector.load %arg1[%c8, %c0_8] : memref<24x128xf32, #tpu.memory_space<vmem>>, vector<8x128xf32>
    %c16 = arith.constant 16 : index
    %c0_9 = arith.constant 0 : index
    %12 = vector.load %arg1[%c16, %c0_9] : memref<24x128xf32, #tpu.memory_space<vmem>>, vector<8x128xf32>
    %cst_10 = arith.constant 0.000000e+00 : f32
    %13 = vector.broadcast %cst_10 : f32 to vector<1x128xf32>
    %14 = arith.maximumf %6, %13 : vector<1x128xf32>
    %15 = arith.mulf %6, %7 : vector<1x128xf32>
    %16 = arith.subf %14, %15 : vector<1x128xf32>
    %17 = math.absf %6 : vector<1x128xf32>
    %cst_11 = arith.constant 0.000000e+00 : f32
    %18 = vector.broadcast %cst_11 : f32 to vector<1x128xf32>
    %19 = arith.subf %18, %17 : vector<1x128xf32>
    %20 = math.exp %19 : vector<1x128xf32>
    %cst_12 = arith.constant 1.000000e+00 : f32
    %21 = vector.broadcast %cst_12 : f32 to vector<1x128xf32>
    %22 = arith.addf %21, %20 : vector<1x128xf32>
    %23 = math.log %22 : vector<1x128xf32>
    %24 = arith.addf %16, %23 : vector<1x128xf32>
    %25 = arith.addf %3, %24 : vector<1x128xf32>
    %26 = arith.subf %8, %9 : vector<1x128xf32>
    %27 = math.absf %26 : vector<1x128xf32>
    %cst_13 = arith.constant 0.111111112 : f32
    %28 = vector.broadcast %cst_13 : f32 to vector<1x128xf32>
    %29 = arith.cmpf ole, %27, %28 : vector<1x128xf32>
    %cst_14 = arith.constant 4.500000e+00 : f32
    %30 = vector.broadcast %cst_14 : f32 to vector<1x128xf32>
    %31 = arith.mulf %30, %27 : vector<1x128xf32>
    %32 = arith.mulf %31, %27 : vector<1x128xf32>
    %cst_15 = arith.constant 0.055555556 : f32
    %33 = vector.broadcast %cst_15 : f32 to vector<1x128xf32>
    %34 = arith.subf %27, %33 : vector<1x128xf32>
    %35 = arith.select %29, %32, %34 : vector<1x128xi1>, vector<1x128xf32>
    %36 = arith.mulf %35, %7 : vector<1x128xf32>
    %37 = arith.addf %4, %36 : vector<1x128xf32>
    %38 = arith.subf %11, %12 : vector<8x128xf32>
    %39 = math.absf %38 : vector<8x128xf32>
    %cst_16 = arith.constant 0.111111112 : f32
    %40 = vector.broadcast %cst_16 : f32 to vector<8x128xf32>
    %41 = arith.cmpf ole, %39, %40 : vector<8x128xf32>
    %cst_17 = arith.constant 4.500000e+00 : f32
    %42 = vector.broadcast %cst_17 : f32 to vector<8x128xf32>
    %43 = arith.mulf %42, %39 : vector<8x128xf32>
    %44 = arith.mulf %43, %39 : vector<8x128xf32>
    %cst_18 = arith.constant 0.055555556 : f32
    %45 = vector.broadcast %cst_18 : f32 to vector<8x128xf32>
    %46 = arith.subf %39, %45 : vector<8x128xf32>
    %47 = arith.select %41, %44, %46 : vector<8x128xi1>, vector<8x128xf32>
    %48 = vector.broadcast %10 : vector<1x128xf32> to vector<8x128xf32>
    %49 = arith.mulf %47, %48 : vector<8x128xf32>
    %50 = arith.addf %5, %49 : vector<8x128xf32>
    %c0_19 = arith.constant 0 : index
    %c0_20 = arith.constant 0 : index
    %51 = vector.load %arg2[%c0_19, %c0_20] : memref<16x128xf32, #tpu.memory_space<vmem>>, vector<8x128xf32>
    %52 = arith.addf %51, %50 : vector<8x128xf32>
    %c0_21 = arith.constant 0 : index
    %c0_22 = arith.constant 0 : index
    %53 = vector.load %arg2[%c0_21, %c0_22] : memref<16x128xf32, #tpu.memory_space<vmem>>, vector<8x128xf32>
    tpu.vector_store %arg2[%c0_21, %c0_22], %52 {strides = array<i32>} : memref<16x128xf32, #tpu.memory_space<vmem>>, vector<8x128xf32>,
    %c8_23 = arith.constant 8 : index
    %c0_24 = arith.constant 0 : index
    %54 = vector.load %arg2[%c8_23, %c0_24] : memref<16x128xf32, #tpu.memory_space<vmem>>, vector<1x128xf32>
    %55 = arith.addf %54, %25 : vector<1x128xf32>
    %c8_25 = arith.constant 8 : index
    %c0_26 = arith.constant 0 : index
    %56 = vector.load %arg2[%c8_25, %c0_26] : memref<16x128xf32, #tpu.memory_space<vmem>>, vector<1x128xf32>
    tpu.vector_store %arg2[%c8_25, %c0_26], %55 {strides = array<i32>} : memref<16x128xf32, #tpu.memory_space<vmem>>, vector<1x128xf32>,
    %c9 = arith.constant 9 : index
    %c0_27 = arith.constant 0 : index
    %57 = vector.load %arg2[%c9, %c0_27] : memref<16x128xf32, #tpu.memory_space<vmem>>, vector<1x128xf32>
    %58 = arith.addf %57, %37 : vector<1x128xf32>
    %c9_28 = arith.constant 9 : index
    %c0_29 = arith.constant 0 : index
    %59 = vector.load %arg2[%c9_28, %c0_29] : memref<16x128xf32, #tpu.memory_space<vmem>>, vector<1x128xf32>
    tpu.vector_store %arg2[%c9_28, %c0_29], %58 {strides = array<i32>} : memref<16x128xf32, #tpu.memory_space<vmem>>, vector<1x128xf32>,
    return
  }
  func.func @transform_0(%arg0: i32) -> (i32, i32) {
    %c0_i32 = arith.constant 0 : i32
    %c0_i32_0 = arith.constant 0 : i32
    return %c0_i32, %arg0 : i32, i32
  }
  func.func @transform_1(%arg0: i32) -> (i32, i32) {
    %c0_i32 = arith.constant 0 : i32
    %c0_i32_0 = arith.constant 0 : i32
    %c0_i32_1 = arith.constant 0 : i32
    return %c0_i32, %c0_i32_0 : i32, i32
  }
}

</mosaic_0001>

<llo_original>
// kernel: tpu_custom_call.1
$region0: #{tpu_custom_call.1}
  #allocation0 [shape = 'u32[]', space=smem, size = 0x4, offset = 0x4, fixed_abs, tag = 'smem constant byte address 0x4 - core index']
  #allocation1 [shape = 'u32[144,128]{1,0:T(1,128)}', space=vmem, size = 0x12000, scoped, tag = 'internal scratch']
  %s0 = inlined_call_operand.hbm [shape: f32[24,128], index: 0, kind: input, shape index: {}]
  %s1 = inlined_call_operand.hbm [shape: f32[16,128], index: 1, kind: output, shape index: {}]
  %s2 = sld [smem:[#allocation0]]
  $region22: #{tpu_custom_call.1} parent=0
    _
  %s4 = ssub.s32 1, %s2
  %s5 = scalar_select 0, %s4, %s2
  $region1: #{tpu_custom_call.1} parent=0
    #allocation2 [shape = 'u8[12288]{0}', space=vmem, size = 0x3000, scoped, tag = 'input window, operand 0, single buffered']
    #allocation3 [shape = 's32[1]{0}', space=sflag, size = 0x4, scoped, tag = 'scoped memory for tpu_custom_call.1']
    #allocation4 [shape = 's32[1]{0}', space=sflag, size = 0x4, scoped, tag = 'scoped memory for tpu_custom_call.1']
    #allocation5 [shape = 'u8[8192]{0}', space=vmem, size = 0x2000, scoped, tag = 'output window, operand 0, single buffered']
    %6 = vsyncpa [#allocation3], 0
    %7 = vsyncpa [#allocation4], 0
    // Predicated region
    $region2: #{tpu_custom_call.1} parent=1 // pred_check
      _
    $region3: #{tpu_custom_call.1} parent=1 // pred_check_branch
      %9 = sbr.rel (0) target = $region5
    $region4: #{tpu_custom_call.1} parent=1 // pred_region
      %s11 = ssub.s32 384, 384
      %12 = vsyncadd [#allocation3], %s11
      %s13 = sshll.u32 [#allocation2], 4
      %s14 = int_to_ptr.vmem [resolvable:$true] %s13
      %19 = dma.hbm_to_vmem [thread:$0]  %s0, 384, %s14, [#allocation3], 128, 128, 8
    $region5: #{tpu_custom_call.1} parent=1 // pred_fallthru
      _
    // Predicated region
    $region6: #{tpu_custom_call.1} parent=1 // pred_check
      _
    $region7: #{tpu_custom_call.1} parent=1 // pred_check_branch
      %21 = sbr.rel (0) target = $region9
    $region8: #{tpu_custom_call.1} parent=1 // pred_region
      %22 = dma.done [#allocation3], 384
    $region9: #{tpu_custom_call.1} parent=1 // pred_fallthru
      _
    %p23 = scmp.eq.s32.totalorder 0, 0
    // Predicated region
    $region10: #{tpu_custom_call.1} parent=1 // pred_check
      %p24 = pneg %p23
    $region11: #{tpu_custom_call.1} parent=1 // pred_check_branch
      %26 = sbr.rel (%p24) target = $region13
    $region12: #{tpu_custom_call.1} parent=1 // pred_region
      %27 = vst [vmem:[#allocation5] sm:$0xff] 0.0
      %28 = vst [vmem:[#allocation5 + $0x8] sm:$0xff] 0.0
    $region13: #{tpu_custom_call.1} parent=1 // pred_fallthru
      _
    %v29 = vld [vmem:[#allocation2] sm:$0x1]
    %v30 = vld [vmem:[#allocation2 + $0x1] sm:$0x1]
    %v31 = vld [vmem:[#allocation2 + $0x2] sm:$0x1]
    %v32 = vld [vmem:[#allocation2 + $0x3] sm:$0x1]
    %v33 = vld [vmem:[#allocation2 + $0x4] sm:$0x1]
    %v34 = vld [vmem:[#allocation2 + $0x8] sm:$0xff]
    %v35 = vld [vmem:[#allocation2 + $0x10] sm:$0xff]
    %v36 = vmax.f32 %v29, 0.0
    %v37 = vmul.f32 %v29, %v30
    %v38 = vsub.f32 %v36, %v37
    %v39 = vand.u32 2147483647, %v29
    %v40 = vsub.f32 0.0, %v39
    %v41 = vmul.f32 %v40, 1.442695
    %v42 = vpow.pop %v41
    %v43 = vadd.f32 %v42, 1.0
    %v44 = vlog2.pop %v43
    %v45 = vmul.f32 %v44, 0.6931472
    %v46 = vadd.f32 %v38, %v45
    %v47 = vadd.f32 %v46, 0.0
    %v48 = vsub.f32 %v31, %v32
    %v49 = vand.u32 2147483647, %v48
    %vm50 = vcmp.le.f32.partialorder %v49, 0.11111111
    %v51 = vmul.f32 %v49, 4.5
    %v52 = vmul.f32 %v51, %v49
    %v53 = vsub.f32 %v49, 0.055555556
    %v54 = vsel %vm50, %v52, %v53
    %v55 = vmul.f32 %v54, %v30
    %v56 = vadd.f32 %v55, 0.0
    %v57 = vsub.f32 %v34, %v35
    %v58 = vand.u32 2147483647, %v57
    %vm59 = vcmp.le.f32.partialorder %v58, 0.11111111
    %v60 = vmul.f32 %v58, 4.5
    %v61 = vmul.f32 %v60, %v58
    %v62 = vsub.f32 %v58, 0.055555556
    %v63 = vsel %vm59, %v61, %v62
    %v64 = vlaneseq
    %v65 = vshrl.u32 %v64, 7
    %v66 = vsub.s32 0, %v65
    %v67 = vrot.slane %v33, %v66
    %v68 = vmul.f32 %v63, %v67
    %v69 = vadd.f32 %v68, 0.0
    %v70 = vld [vmem:[#allocation5] sm:$0xff]
    %v71 = vadd.f32 %v70, %v69
    %72 = vst [vmem:[#allocation5] sm:$0xff] %v71
    %v73 = vld [vmem:[#allocation5 + $0x8] sm:$0x1]
    %v74 = vadd.f32 %v73, %v47
    %75 = vst [vmem:[#allocation5 + $0x8] sm:$0x1] %v74
    %v76 = vld [vmem:[#allocation5 + $0x9] sm:$0x1]
    %v77 = vadd.f32 %v76, %v56
    %78 = vst [vmem:[#allocation5 + $0x9] sm:$0x1] %v77
    // Predicated region
    $region14: #{tpu_custom_call.1} parent=1 // pred_check
      _
    $region15: #{tpu_custom_call.1} parent=1 // pred_check_branch
      %80 = sbr.rel (0) target = $region17
    $region16: #{tpu_custom_call.1} parent=1 // pred_region
      %s82 = ssub.s32 256, 256
      %83 = vsyncadd [#allocation4], %s82
      %s84 = sshll.u32 [#allocation5], 4
      %s85 = int_to_ptr.vmem [resolvable:$true] %s84
      %90 = dma.vmem_to_hbm [thread:$0]  %s85, 256, %s1, [#allocation4], 128, 128, 8
    $region17: #{tpu_custom_call.1} parent=1 // pred_fallthru
      _
    // Predicated region
    $region18: #{tpu_custom_call.1} parent=1 // pred_check
      _
    $region19: #{tpu_custom_call.1} parent=1 // pred_check_branch
      %92 = sbr.rel (0) target = $region21
    $region20: #{tpu_custom_call.1} parent=1 // pred_region
      %93 = dma.done [#allocation4], 256
    $region21: #{tpu_custom_call.1} parent=1 // pred_fallthru
      _
    %94 = vsyncpa [#allocation3], 1
    %95 = vsyncpa [#allocation4], 1

</llo_original>
